<compile_context>
chip_gen: v6e
topology: v6e:2x2x1
jax: 0.10.0
libtpu: 0.0.40
codegen_flags: <defaults>
</compile_context>

<pallas_src>
import functools

import jax
import jax.numpy as jnp
from jax.experimental import pallas as pl
from jax.experimental.pallas import tpu as pltpu


def _round_up(x, m):
    return ((x + m - 1) // m) * m


def _apply_activation(h, activation):
    if activation == "relu":
        return jnp.maximum(h, 0.0)
    if activation == "tanh":
        return jnp.tanh(h)
    if activation == "sigmoid":
        return jax.nn.sigmoid(h)
    return h  # 'linear' -> torch appends no activation module


def _mlp_softmax_kernel(*refs, num_layers, activation):
    """One batch tile of the whole MLP: num_layers matmuls + activations + softmax.

    refs = (x_ref, w1_ref, b1_ref, ..., wN_ref, bN_ref, o_ref)
    Weights arrive bf16 (MXU inputs); biases, activations and softmax stay f32.
    """
    x_ref = refs[0]
    o_ref = refs[-1]
    wb = refs[1:-1]

    # Cast to bf16 on-chip for the MXU.  The HBM stream keeps the caller's
    # dtype (pass bf16 x to halve the input DMA as well).
    h = x_ref[...].astype(jnp.bfloat16)

    z = None
    for i in range(num_layers):
        w = wb[2 * i][...]        # (in, out)  bf16, VMEM-resident
        b = wb[2 * i + 1][...]    # (1, out)   f32,  VMEM-resident
        z = jnp.dot(h, w, preferred_element_type=jnp.float32) + b
        if i < num_layers - 1:
            h = _apply_activation(z, activation).astype(jnp.bfloat16)

    # Row-wise softmax over the true output lanes (no lane padding, no -inf
    # bias trick).  Exact division so downstream sampling sees sum == 1.
    m = jnp.max(z, axis=-1, keepdims=True)
    e = jnp.exp(z - m)
    o_ref[...] = (e / jnp.sum(e, axis=-1, keepdims=True)).astype(o_ref.dtype)


def prepare_params(params):
    """One-time parameter prep (hoisted off the per-call hot path).

    params = [(W, b), ...] with W stored [in, out].  Weights are cast to bf16
    (MXU-input only); biases kept f32 with shape (1, out).
    """
    prepped = []
    for w, b in params:
        prepped.append((jnp.asarray(w, jnp.bfloat16),
                        jnp.asarray(b, jnp.float32).reshape(1, -1)))
    return prepped


def neuralnet_forward(x, prepared_params, activation="relu", batch_tile=8192,
                      min_grid_steps=2):
    """Pallas forward.  prepared_params from prepare_params(); returns f32 probs."""
    batch, in_dim = x.shape
    out_dim = prepared_params[-1][0].shape[1]
    num_layers = len(prepared_params)

    # --- Batch tiling --------------------------------------------------------
    # Aim for >= min_grid_steps grid steps once the batch is big enough to split
    # (so the "parallel" batch axis shards across both v7x TensorCores), while
    # padding the batch by at most one sublane group (8 rows) per tile.
    grid_steps = pl.cdiv(batch, batch_tile)
    if batch >= 2 * 8:
        grid_steps = max(grid_steps, min_grid_steps)
    tb = _round_up(pl.cdiv(batch, grid_steps), 8)
    bp = tb * grid_steps

    # Row-pad only when needed (tiny); the feature dim is never padded, so there
    # is no full extra HBM pass over x before the kernel.
    if bp != batch:
        x = jnp.pad(x, ((0, bp - batch), (0, 0)))

    kernel = functools.partial(_mlp_softmax_kernel,
                               num_layers=num_layers, activation=activation)

    def resident(arr):
        # Full-array block + constant index_map -> DMA'd once, stays resident in
        # VMEM across every batch tile.
        return pl.BlockSpec(arr.shape, lambda i: (0, 0))

    wb_flat = [t for wb in prepared_params for t in wb]
    in_specs = [pl.BlockSpec((tb, in_dim), lambda i: (i, 0))]  # x streamed per tile
    in_specs += [resident(t) for t in wb_flat]

    out = pl.pallas_call(
        kernel,
        out_shape=jax.ShapeDtypeStruct((bp, out_dim), jnp.float32),
        grid=(grid_steps,),
        in_specs=in_specs,
        out_specs=pl.BlockSpec((tb, out_dim), lambda i: (i, 0)),
        compiler_params=pltpu.CompilerParams(
            dimension_semantics=("parallel",),        # independent batch tiles
            vmem_limit_bytes=32 * 1024 * 1024),
    )(x, *wb_flat)

    return out[:batch] if bp != batch else out


def xavier_uniform(key, fan_in, fan_out, dtype=jnp.float32):
    """Matches torch.nn.init.xavier_uniform_ (gain=1); stored [in, out]."""
    limit = jnp.sqrt(6.0 / (fan_in + fan_out))
    return jax.random.uniform(key, (fan_in, fan_out), dtype=dtype,
                              minval=-limit, maxval=limit)


def init_params(key, k, dimensions):
    input_size = 2 * k ** 2 + 2
    output_size = k ** 2
    sizes = [input_size] + list(dimensions) + [output_size]
    params = []
    for i in range(len(sizes) - 1):
        key, sub = jax.random.split(key)
        w = xavier_uniform(sub, sizes[i], sizes[i + 1])
        b = jnp.full((1, sizes[i + 1]), 0.01, dtype=jnp.float32)  # bias.fill_(0.01)
        params.append((w, b))
    return params


if __name__ == "__main__":
    k = 4
    dimensions = [32, 32]
    activation = "relu"
    batch = 2
    input_size = 2 * k ** 2 + 2  # 34

    key = jax.random.PRNGKey(0)
    key_x, key_p = jax.random.split(key)

    x = jax.random.normal(key_x, (batch, input_size), dtype=jnp.float32)
    params = init_params(key_p, k, dimensions)
    prepped = prepare_params(params)  # one-time prep, off the per-call path

    out = neuralnet_forward(x, prepped, activation=activation)
    out = jax.block_until_ready(out)

    # Pure-JAX references for correctness.
    def ref_forward(x, params, dot_dtype):
        h = x
        for i, (w, b) in enumerate(params):
            h = jnp.dot(h.astype(dot_dtype), jnp.asarray(w, dot_dtype),
                        preferred_element_type=jnp.float32) + b
            if i < len(params) - 1:
                h = jnp.maximum(h, 0.0)
        return jax.nn.softmax(h, axis=-1)

    ref_bf16 = ref_forward(x, params, jnp.bfloat16)  # same matmul rounding as kernel
    ref_f32 = ref_forward(x, params, jnp.float32)

    assert out.shape == (batch, k ** 2)
    assert jnp.allclose(jnp.sum(out, axis=-1), 1.0, atol=1e-3)
    assert jnp.allclose(out, ref_bf16, atol=5e-3)
    assert jnp.allclose(out, ref_f32, atol=3e-2)

    print("KERNEL_OK")
</pallas_src>

<mosaic_0001>
module attributes {stable_mosaic.version = 11 : i64} {
  func.func @_mlp_softmax_kernel(%arg0: i32, %arg1: memref<8x34xf32, #tpu.memory_space<vmem>>, %arg2: memref<34x32xbf16, #tpu.memory_space<vmem>>, %arg3: memref<1x32xf32, #tpu.memory_space<vmem>>, %arg4: memref<32x32xbf16, #tpu.memory_space<vmem>>, %arg5: memref<1x32xf32, #tpu.memory_space<vmem>>, %arg6: memref<32x16xbf16, #tpu.memory_space<vmem>>, %arg7: memref<1x16xf32, #tpu.memory_space<vmem>>, %arg8: memref<8x16xf32, #tpu.memory_space<vmem>>) attributes {dimension_semantics = [#tpu.dimension_semantics<parallel>], iteration_bounds = array<i64: 1>, scalar_prefetch = 0 : i64, scratch_operands = 0 : i64, tpu.core_type = #tpu.core_type<tc>, window_params = [{transform_indices = @transform_0, window_bounds = array<i64: 8, 34>}, {pipeline_mode = #tpu.pipeline_mode<synchronous>, transform_indices = @transform_1, window_bounds = array<i64: 34, 32>}, {pipeline_mode = #tpu.pipeline_mode<synchronous>, transform_indices = @transform_2, window_bounds = array<i64: 1, 32>}, {pipeline_mode = #tpu.pipeline_mode<synchronous>, transform_indices = @transform_3, window_bounds = array<i64: 32, 32>}, {pipeline_mode = #tpu.pipeline_mode<synchronous>, transform_indices = @transform_4, window_bounds = array<i64: 1, 32>}, {pipeline_mode = #tpu.pipeline_mode<synchronous>, transform_indices = @transform_5, window_bounds = array<i64: 32, 16>}, {pipeline_mode = #tpu.pipeline_mode<synchronous>, transform_indices = @transform_6, window_bounds = array<i64: 1, 16>}, {transform_indices = @transform_7, window_bounds = array<i64: 8, 16>}]} {
    %c0 = arith.constant 0 : index
    %c0_0 = arith.constant 0 : index
    %0 = vector.load %arg1[%c0, %c0_0] : memref<8x34xf32, #tpu.memory_space<vmem>>, vector<8x34xf32>
    %1 = arith.truncf %0 : vector<8x34xf32> to vector<8x34xbf16>
    %c0_1 = arith.constant 0 : index
    %c0_2 = arith.constant 0 : index
    %2 = vector.load %arg2[%c0_1, %c0_2] : memref<34x32xbf16, #tpu.memory_space<vmem>>, vector<34x32xbf16>
    %c0_3 = arith.constant 0 : index
    %c0_4 = arith.constant 0 : index
    %3 = vector.load %arg3[%c0_3, %c0_4] : memref<1x32xf32, #tpu.memory_space<vmem>>, vector<1x32xf32>
    %cst = arith.constant dense<0.000000e+00> : vector<8x32xf32>
    %4 = tpu.matmul %1, %2, %cst {dimension_numbers = #tpu.dot_dimension_numbers<[1], [0], [0], [1], [0, 0, 1, 1], [], []>} : vector<8x34xbf16>, vector<34x32xbf16>, vector<8x32xf32> -> vector<8x32xf32>
    %5 = vector.broadcast %3 : vector<1x32xf32> to vector<8x32xf32>
    %6 = arith.addf %4, %5 : vector<8x32xf32>
    %cst_5 = arith.constant 0.000000e+00 : f32
    %7 = vector.broadcast %cst_5 : f32 to vector<8x32xf32>
    %8 = arith.maximumf %6, %7 : vector<8x32xf32>
    %9 = arith.truncf %8 : vector<8x32xf32> to vector<8x32xbf16>
    %c0_6 = arith.constant 0 : index
    %c0_7 = arith.constant 0 : index
    %10 = vector.load %arg4[%c0_6, %c0_7] : memref<32x32xbf16, #tpu.memory_space<vmem>>, vector<32x32xbf16>
    %c0_8 = arith.constant 0 : index
    %c0_9 = arith.constant 0 : index
    %11 = vector.load %arg5[%c0_8, %c0_9] : memref<1x32xf32, #tpu.memory_space<vmem>>, vector<1x32xf32>
    %cst_10 = arith.constant dense<0.000000e+00> : vector<8x32xf32>
    %12 = tpu.matmul %9, %10, %cst_10 {dimension_numbers = #tpu.dot_dimension_numbers<[1], [0], [0], [1], [0, 0, 1, 1], [], []>} : vector<8x32xbf16>, vector<32x32xbf16>, vector<8x32xf32> -> vector<8x32xf32>
    %13 = vector.broadcast %11 : vector<1x32xf32> to vector<8x32xf32>
    %14 = arith.addf %12, %13 : vector<8x32xf32>
    %cst_11 = arith.constant 0.000000e+00 : f32
    %15 = vector.broadcast %cst_11 : f32 to vector<8x32xf32>
    %16 = arith.maximumf %14, %15 : vector<8x32xf32>
    %17 = arith.truncf %16 : vector<8x32xf32> to vector<8x32xbf16>
    %c0_12 = arith.constant 0 : index
    %c0_13 = arith.constant 0 : index
    %18 = vector.load %arg6[%c0_12, %c0_13] : memref<32x16xbf16, #tpu.memory_space<vmem>>, vector<32x16xbf16>
    %c0_14 = arith.constant 0 : index
    %c0_15 = arith.constant 0 : index
    %19 = vector.load %arg7[%c0_14, %c0_15] : memref<1x16xf32, #tpu.memory_space<vmem>>, vector<1x16xf32>
    %cst_16 = arith.constant dense<0.000000e+00> : vector<8x16xf32>
    %20 = tpu.matmul %17, %18, %cst_16 {dimension_numbers = #tpu.dot_dimension_numbers<[1], [0], [0], [1], [0, 0, 1, 1], [], []>} : vector<8x32xbf16>, vector<32x16xbf16>, vector<8x16xf32> -> vector<8x16xf32>
    %21 = vector.broadcast %19 : vector<1x16xf32> to vector<8x16xf32>
    %22 = arith.addf %20, %21 : vector<8x16xf32>
    %cst_17 = arith.constant dense<0xFF800000> : vector<8xf32>
    %23 = vector.multi_reduction <maximumf>, %22, %cst_17 [1] : vector<8x16xf32> to vector<8xf32>
    %24 = vector.shape_cast %23 : vector<8xf32> to vector<8x1xf32>
    %25 = vector.broadcast %24 : vector<8x1xf32> to vector<8x16xf32>
    %26 = arith.subf %22, %25 : vector<8x16xf32>
    %27 = math.exp %26 : vector<8x16xf32>
    %cst_18 = arith.constant dense<0.000000e+00> : vector<8xf32>
    %28 = vector.multi_reduction <add>, %27, %cst_18 [1] : vector<8x16xf32> to vector<8xf32>
    %29 = vector.shape_cast %28 : vector<8xf32> to vector<8x1xf32>
    %30 = vector.broadcast %29 : vector<8x1xf32> to vector<8x16xf32>
    %31 = arith.divf %27, %30 : vector<8x16xf32>
    %c0_19 = arith.constant 0 : index
    %c0_20 = arith.constant 0 : index
    %32 = vector.load %arg8[%c0_19, %c0_20] : memref<8x16xf32, #tpu.memory_space<vmem>>, vector<8x16xf32>
    tpu.vector_store %arg8[%c0_19, %c0_20], %31 {strides = array<i32>} : memref<8x16xf32, #tpu.memory_space<vmem>>, vector<8x16xf32>,
    return
  }
  func.func @transform_0(%arg0: i32) -> (i32, i32) {
    %c0_i32 = arith.constant 0 : i32
    %c0_i32_0 = arith.constant 0 : i32
    return %arg0, %c0_i32 : i32, i32
  }
  func.func @transform_1(%arg0: i32) -> (i32, i32) {
    %c0_i32 = arith.constant 0 : i32
    %c0_i32_0 = arith.constant 0 : i32
    %c0_i32_1 = arith.constant 0 : i32
    return %c0_i32, %c0_i32_0 : i32, i32
  }
  func.func @transform_2(%arg0: i32) -> (i32, i32) {
    %c0_i32 = arith.constant 0 : i32
    %c0_i32_0 = arith.constant 0 : i32
    %c0_i32_1 = arith.constant 0 : i32
    return %c0_i32, %c0_i32_0 : i32, i32
  }
  func.func @transform_3(%arg0: i32) -> (i32, i32) {
    %c0_i32 = arith.constant 0 : i32
    %c0_i32_0 = arith.constant 0 : i32
    %c0_i32_1 = arith.constant 0 : i32
    return %c0_i32, %c0_i32_0 : i32, i32
  }
  func.func @transform_4(%arg0: i32) -> (i32, i32) {
    %c0_i32 = arith.constant 0 : i32
    %c0_i32_0 = arith.constant 0 : i32
    %c0_i32_1 = arith.constant 0 : i32
    return %c0_i32, %c0_i32_0 : i32, i32
  }
  func.func @transform_5(%arg0: i32) -> (i32, i32) {
    %c0_i32 = arith.constant 0 : i32
    %c0_i32_0 = arith.constant 0 : i32
    %c0_i32_1 = arith.constant 0 : i32
    return %c0_i32, %c0_i32_0 : i32, i32
  }
  func.func @transform_6(%arg0: i32) -> (i32, i32) {
    %c0_i32 = arith.constant 0 : i32
    %c0_i32_0 = arith.constant 0 : i32
    %c0_i32_1 = arith.constant 0 : i32
    return %c0_i32, %c0_i32_0 : i32, i32
  }
  func.func @transform_7(%arg0: i32) -> (i32, i32) {
    %c0_i32 = arith.constant 0 : i32
    %c0_i32_0 = arith.constant 0 : i32
    return %arg0, %c0_i32 : i32, i32
  }
}

</mosaic_0001>

<llo_original>
// kernel: tpu_custom_call.1
$region0: #{tpu_custom_call.1}
  #allocation0 [shape = 'u32[]', space=smem, size = 0x4, offset = 0x4, fixed_abs, tag = 'smem constant byte address 0x4 - core index']
  #allocation1 [shape = 'u32[144,128]{1,0:T(1,128)}', space=vmem, size = 0x12000, scoped, tag = 'internal scratch']
  %s0 = inlined_call_operand.vmem [shape: f32[8,34], index: 0, kind: input, shape index: {}]
  %s1 = inlined_call_operand.vmem [shape: bf16[34,32], index: 1, kind: input, shape index: {}]
  %s2 = inlined_call_operand.vmem [shape: f32[1,32], index: 2, kind: input, shape index: {}]
  %s3 = inlined_call_operand.vmem [shape: bf16[32,32], index: 3, kind: input, shape index: {}]
  %s4 = inlined_call_operand.vmem [shape: f32[1,32], index: 4, kind: input, shape index: {}]
  %s5 = inlined_call_operand.vmem [shape: bf16[32,16], index: 5, kind: input, shape index: {}]
  %s6 = inlined_call_operand.vmem [shape: f32[1,16], index: 6, kind: input, shape index: {}]
  %s7 = inlined_call_operand.hbm [shape: f32[8,16], index: 7, kind: output, shape index: {}]
  %s8 = sld [smem:[#allocation0]]
  $region38: #{tpu_custom_call.1} parent=0
    _
  %s10 = ssub.s32 1, %s8
  %s11 = scalar_select 0, %s10, %s8
  $region1: #{tpu_custom_call.1} parent=0
    #allocation2 [shape = 'u8[4096]{0}', space=vmem, size = 0x1000, scoped, tag = 'output window, operand 0, single buffered']
    #allocation3 [shape = 's32[1]{0}', space=sflag, size = 0x4, scoped, tag = 'scoped memory for tpu_custom_call.1']
    %12 = vsyncpa [#allocation3], 0
    // Predicated region
    $region2: #{tpu_custom_call.1} parent=1 // pred_check
      _
    $region3: #{tpu_custom_call.1} parent=1 // pred_check_branch
      %14 = sbr.rel (0) target = $region5
    $region4: #{tpu_custom_call.1} parent=1 // pred_region
      _
    $region5: #{tpu_custom_call.1} parent=1 // pred_fallthru
      _
    // Predicated region
    $region6: #{tpu_custom_call.1} parent=1 // pred_check
      _
    $region7: #{tpu_custom_call.1} parent=1 // pred_check_branch
      %16 = sbr.rel (0) target = $region9
    $region8: #{tpu_custom_call.1} parent=1 // pred_region
      _
    $region9: #{tpu_custom_call.1} parent=1 // pred_fallthru
      _
    // Predicated region
    $region10: #{tpu_custom_call.1} parent=1 // pred_check
      _
    $region11: #{tpu_custom_call.1} parent=1 // pred_check_branch
      %18 = sbr.rel (0) target = $region13
    $region12: #{tpu_custom_call.1} parent=1 // pred_region
      _
    $region13: #{tpu_custom_call.1} parent=1 // pred_fallthru
      _
    // Predicated region
    $region14: #{tpu_custom_call.1} parent=1 // pred_check
      _
    $region15: #{tpu_custom_call.1} parent=1 // pred_check_branch
      %20 = sbr.rel (0) target = $region17
    $region16: #{tpu_custom_call.1} parent=1 // pred_region
      _
    $region17: #{tpu_custom_call.1} parent=1 // pred_fallthru
      _
    // Predicated region
    $region18: #{tpu_custom_call.1} parent=1 // pred_check
      _
    $region19: #{tpu_custom_call.1} parent=1 // pred_check_branch
      %22 = sbr.rel (0) target = $region21
    $region20: #{tpu_custom_call.1} parent=1 // pred_region
      _
    $region21: #{tpu_custom_call.1} parent=1 // pred_fallthru
      _
    // Predicated region
    $region22: #{tpu_custom_call.1} parent=1 // pred_check
      _
    $region23: #{tpu_custom_call.1} parent=1 // pred_check_branch
      %24 = sbr.rel (0) target = $region25
    $region24: #{tpu_custom_call.1} parent=1 // pred_region
      _
    $region25: #{tpu_custom_call.1} parent=1 // pred_fallthru
      _
    // Predicated region
    $region26: #{tpu_custom_call.1} parent=1 // pred_check
      _
    $region27: #{tpu_custom_call.1} parent=1 // pred_check_branch
      %26 = sbr.rel (0) target = $region29
    $region28: #{tpu_custom_call.1} parent=1 // pred_region
      _
    $region29: #{tpu_custom_call.1} parent=1 // pred_fallthru
      _
    %v28 = vld [vmem:[%s0] sm:$0xff]
    %v29 = vpack.c.bf16 %v28, %v28
    %v30 = vld [vmem:[%s1] sm:$0xf]
    %v31 = vld [vmem:[%s1 + $0x4] sm:$0xf]
    %v32 = vld [vmem:[%s1 + $0x8] sm:$0xf]
    %v33 = vld [vmem:[%s1 + $0xc] sm:$0xf]
    %v34 = vld [vmem:[%s1 + $0x10] sm:$0x1]
    %v35 = vld [vmem:[%s2] sm:$0x1]
    %v37 = vlaneseq
    %v38 = vshrl.u32 %v37, 7
    %v39 = vsub.s32 0, %v38
    %v40 = vrot.slane %v35, %v39
    %v47 = vunpack.c.l.b16 %v30
    %v48 = vunpack.c.l.b16 %v31
    %v49 = vunpack.c.l.b16 %v32
    %v50 = vunpack.c.l.b16 %v33
    %v51 = vunpack.c.l.b16 %v34
    %v52 = vpack.c.b16 %v48, %v47
    %v53 = vpack.c.b16 %v50, %v49
    %v54 = vpack.c.b16 %v51, %v51
    %vm57 = vcmask 277504
    %v59 = vsel %vm57, %v29, 0
    %vm61 = vcmask 1040384
    %v63 = vsel %vm61, %v54, 0
    %65 = vmatprep.subr.bf16.mxu0 0
    %66 = vmatpush1.bf16.msra.mxu0 0
    %67 = vmatprep.subr.bf16.mxu0 0
    %68 = vmatpush1.bf16.msra.mxu0 0
    %69 = vmatprep.subr.bf16.mxu0 0
    %70 = vmatpush1.bf16.msra.mxu0 0
    %71 = vmatprep.subr.bf16.mxu0 0
    %72 = vmatpush1.bf16.msra.mxu0 0
    %73 = vmatprep.subr.bf16.mxu0 0
    %74 = vmatpush1.bf16.msra.mxu0 0
    %75 = vmatprep.subr.bf16.mxu0 0
    %76 = vmatpush1.bf16.msra.mxu0 %v63
    %77 = vmatprep.subr.bf16.mxu0 0
    %78 = vmatpush1.bf16.msra.mxu0 %v53
    %79 = vmatprep.subr.bf16.mxu0 0
    %80 = vmatpush1.bf16.msra.mxu0 %v52
    %81 = vmatprep.subr.bf16.mxu0 0
    %82 = vmatpush2.bf16.msra.mxu0 0
    %83 = vmatprep.subr.bf16.mxu0 0
    %84 = vmatpush2.bf16.msra.mxu0 0
    %85 = vmatprep.subr.bf16.mxu0 0
    %86 = vmatpush2.bf16.msra.mxu0 0
    %87 = vmatprep.subr.bf16.mxu0 0
    %88 = vmatpush2.bf16.msra.mxu0 0
    %89 = vmatprep.subr.bf16.mxu0 0
    %90 = vmatpush2.bf16.msra.mxu0 0
    %91 = vmatprep.subr.bf16.mxu0 0
    %92 = vmatpush2.bf16.msra.mxu0 0
    %93 = vmatprep.subr.bf16.mxu0 0
    %94 = vmatpush2.bf16.msra.mxu0 0
    %95 = vmatprep.subr.bf16.mxu0 0
    %96 = vmatpush2.bf16.msra.mxu0 0
    %97 = vmatprep.mubr.bf16.mxu0 0
    %98 = vmatmul.mubr.bf16.gmra.mxu0 %v59
    %v99 = vpop.f32.mrf.mxu0
    %v100 = vadd.f32 %v40, %v99
    %v101 = vpop.f32.mrf.mxu0
    %v102 = vpop.f32.mrf.mxu0
    %v103 = vpop.f32.mrf.mxu0
    %104 = vdwg.mxu0
    %v105 = vmax.f32 %v100, 0.0
    %v106 = vpack.c.bf16 %v105, %v105
    %v107 = vld [vmem:[%s3] sm:$0xf]
    %v108 = vld [vmem:[%s3 + $0x4] sm:$0xf]
    %v109 = vld [vmem:[%s3 + $0x8] sm:$0xf]
    %v110 = vld [vmem:[%s3 + $0xc] sm:$0xf]
    %v111 = vld [vmem:[%s4] sm:$0x1]
    %v113 = vlaneseq
    %v114 = vshrl.u32 %v113, 7
    %v115 = vsub.s32 0, %v114
    %v116 = vrot.slane %v111, %v115
    %v122 = vunpack.c.l.b16 %v107
    %v123 = vunpack.c.l.b16 %v108
    %v124 = vunpack.c.l.b16 %v109
    %v125 = vunpack.c.l.b16 %v110
    %v126 = vpack.c.b16 %v123, %v122
    %v127 = vpack.c.b16 %v125, %v124
    %vm130 = vcmask 261120
    %v132 = vsel %vm130, %v106, 0
    %134 = vmatprep.subr.bf16.mxu0 0
    %135 = vmatpush1.bf16.msra.mxu0 0
    %136 = vmatprep.subr.bf16.mxu0 0
    %137 = vmatpush1.bf16.msra.mxu0 0
    %138 = vmatprep.subr.bf16.mxu0 0
    %139 = vmatpush1.bf16.msra.mxu0 0
    %140 = vmatprep.subr.bf16.mxu0 0
    %141 = vmatpush1.bf16.msra.mxu0 0
    %142 = vmatprep.subr.bf16.mxu0 0
    %143 = vmatpush1.bf16.msra.mxu0 0
    %144 = vmatprep.subr.bf16.mxu0 0
    %145 = vmatpush1.bf16.msra.mxu0 0
    %146 = vmatprep.subr.bf16.mxu0 0
    %147 = vmatpush1.bf16.msra.mxu0 %v127
    %148 = vmatprep.subr.bf16.mxu0 0
    %149 = vmatpush1.bf16.msra.mxu0 %v126
    %150 = vmatprep.subr.bf16.mxu0 0
    %151 = vmatpush2.bf16.msra.mxu0 0
    %152 = vmatprep.subr.bf16.mxu0 0
    %153 = vmatpush2.bf16.msra.mxu0 0
    %154 = vmatprep.subr.bf16.mxu0 0
    %155 = vmatpush2.bf16.msra.mxu0 0
    %156 = vmatprep.subr.bf16.mxu0 0
    %157 = vmatpush2.bf16.msra.mxu0 0
    %158 = vmatprep.subr.bf16.mxu0 0
    %159 = vmatpush2.bf16.msra.mxu0 0
    %160 = vmatprep.subr.bf16.mxu0 0
    %161 = vmatpush2.bf16.msra.mxu0 0
    %162 = vmatprep.subr.bf16.mxu0 0
    %163 = vmatpush2.bf16.msra.mxu0 0
    %164 = vmatprep.subr.bf16.mxu0 0
    %165 = vmatpush2.bf16.msra.mxu0 0
    %166 = vmatprep.mubr.bf16.mxu0 0
    %167 = vmatmul.mubr.bf16.gmra.mxu0 %v132
    %v168 = vpop.f32.mrf.mxu0
    %v169 = vadd.f32 %v116, %v168
    %v170 = vpop.f32.mrf.mxu0
    %v171 = vpop.f32.mrf.mxu0
    %v172 = vpop.f32.mrf.mxu0
    %173 = vdwg.mxu0
    %v174 = vmax.f32 %v169, 0.0
    %v175 = vpack.c.bf16 %v174, %v174
    %v176 = vld [vmem:[%s5] sm:$0xf]
    %v177 = vld [vmem:[%s5 + $0x4] sm:$0xf]
    %v178 = vld [vmem:[%s5 + $0x8] sm:$0xf]
    %v179 = vld [vmem:[%s5 + $0xc] sm:$0xf]
    %v180 = vld [vmem:[%s6] sm:$0x1]
    %v182 = vlaneseq
    %v183 = vshrl.u32 %v182, 7
    %v184 = vsub.s32 0, %v183
    %v185 = vrot.slane %v180, %v184
    %v191 = vunpack.c.l.b16 %v176
    %v192 = vunpack.c.l.b16 %v177
    %v193 = vunpack.c.l.b16 %v178
    %v194 = vunpack.c.l.b16 %v179
    %v195 = vpack.c.b16 %v192, %v191
    %v196 = vpack.c.b16 %v194, %v193
    %v200 = vsel %vm130, %v175, 0
    %202 = vmatprep.subr.bf16.mxu0 0
    %203 = vmatpush1.bf16.msra.mxu0 0
    %204 = vmatprep.subr.bf16.mxu0 0
    %205 = vmatpush1.bf16.msra.mxu0 0
    %206 = vmatprep.subr.bf16.mxu0 0
    %207 = vmatpush1.bf16.msra.mxu0 0
    %208 = vmatprep.subr.bf16.mxu0 0
    %209 = vmatpush1.bf16.msra.mxu0 0
    %210 = vmatprep.subr.bf16.mxu0 0
    %211 = vmatpush1.bf16.msra.mxu0 0
    %212 = vmatprep.subr.bf16.mxu0 0
    %213 = vmatpush1.bf16.msra.mxu0 0
    %214 = vmatprep.subr.bf16.mxu0 0
    %215 = vmatpush1.bf16.msra.mxu0 %v196
    %216 = vmatprep.subr.bf16.mxu0 0
    %217 = vmatpush1.bf16.msra.mxu0 %v195
    %218 = vmatprep.subr.bf16.mxu0 0
    %219 = vmatpush2.bf16.msra.mxu0 0
    %220 = vmatprep.subr.bf16.mxu0 0
    %221 = vmatpush2.bf16.msra.mxu0 0
    %222 = vmatprep.subr.bf16.mxu0 0
    %223 = vmatpush2.bf16.msra.mxu0 0
    %224 = vmatprep.subr.bf16.mxu0 0
    %225 = vmatpush2.bf16.msra.mxu0 0
    %226 = vmatprep.subr.bf16.mxu0 0
    %227 = vmatpush2.bf16.msra.mxu0 0
    %228 = vmatprep.subr.bf16.mxu0 0
    %229 = vmatpush2.bf16.msra.mxu0 0
    %230 = vmatprep.subr.bf16.mxu0 0
    %231 = vmatpush2.bf16.msra.mxu0 0
    %232 = vmatprep.subr.bf16.mxu0 0
    %233 = vmatpush2.bf16.msra.mxu0 0
    %234 = vmatprep.mubr.bf16.mxu0 0
    %235 = vmatmul.mubr.bf16.gmra.mxu0 %v200
    %v236 = vpop.f32.mrf.mxu0
    %v237 = vadd.f32 %v185, %v236
    %v238 = vpop.f32.mrf.mxu0
    %v239 = vpop.f32.mrf.mxu0
    %v240 = vpop.f32.mrf.mxu0
    %241 = vdwg.mxu0
    %vm242 = vcmask 130048
    %v243 = vsel %vm242, %v237, -inf
    %244 = vmax.xlane.f32.xlu0 %v243
    %v245 = vpop.xlane.xlu0 %244
    %v246 = vsub.f32 %v237, %v245
    %v247 = vmul.f32 %v246, 1.442695
    %v248 = vpow.pop %v247
    %v249 = vsel %vm242, %v248, 0.0
    %250 = vadd.xlane.f32.xlu0 %v249
    %v251 = vpop.xlane.xlu0 %250
    %v252 = vrcp.pop %v251
    %v253 = vmul.f32 %v248, %v252
    %254 = vst.msk [vmem:[#allocation2] sm:$0xff] %vm242, %v253
    // Predicated region
    $region30: #{tpu_custom_call.1} parent=1 // pred_check
      _
    $region31: #{tpu_custom_call.1} parent=1 // pred_check_branch
      %256 = sbr.rel (0) target = $region33
    $region32: #{tpu_custom_call.1} parent=1 // pred_region
      %s258 = ssub.s32 128, 128
      %259 = vsyncadd [#allocation3], %s258
      %s261 = sshll.u32 [#allocation2], 4
      %s262 = int_to_ptr.vmem [resolvable:$true] %s261
      %264 = dma.vmem_to_hbm [thread:$0]  %s262, 128, %s7, [#allocation3]
    $region33: #{tpu_custom_call.1} parent=1 // pred_fallthru
      _
    // Predicated region
    $region34: #{tpu_custom_call.1} parent=1 // pred_check
      _
    $region35: #{tpu_custom_call.1} parent=1 // pred_check_branch
      %266 = sbr.rel (0) target = $region37
    $region36: #{tpu_custom_call.1} parent=1 // pred_region
      %267 = dma.done [#allocation3], 128
    $region37: #{tpu_custom_call.1} parent=1 // pred_fallthru
      _
    %268 = vsyncpa [#allocation3], 1

</llo_original>
